<compile_context>
chip_gen: v7x
topology: tpu7x:2x2x1
jax: 0.10.0
libtpu: 0.0.40
codegen_flags: <defaults>
</compile_context>

<pallas_src>
import numpy as np
import jax
import jax.numpy as jnp
from jax.experimental import pallas as pl
from jax.experimental.pallas import tpu as pltpu


# -----------------------------------------------------------------------------
# Hot path: exact module semantics, no kernel, no data movement.
# -----------------------------------------------------------------------------
def dropx2_fusion(x1, x2):
    """Kernel-free equivalent of DropX2Fusion.forward(x1, x2) -> x1."""
    del x2  # dropped, exactly as in the PyTorch module
    return x1


# -----------------------------------------------------------------------------
# Pallas path 1: aliased zero-copy pass-through (no data movement at all).
# -----------------------------------------------------------------------------
def _touch_kernel(x_ref, o_ref):
    # Output aliases the input buffer, so it already contains x1's bytes.
    # Only pin ordering; issue no loads/stores and no DMA.
    pltpu.touch(o_ref)


def _alias_passthrough(x1):
    return pl.pallas_call(
        _touch_kernel,
        out_shape=jax.ShapeDtypeStruct(x1.shape, x1.dtype),
        in_specs=[pl.BlockSpec(memory_space=pl.ANY)],
        out_specs=pl.BlockSpec(memory_space=pl.ANY),
        input_output_aliases={0: 0},
        compiler_params=pltpu.CompilerParams(has_side_effects=True),
    )(x1)


# -----------------------------------------------------------------------------
# Pallas path 2: one whole-array HBM->HBM DMA copy (no grid, no VMEM tiles).
# -----------------------------------------------------------------------------
def _dma_copy_kernel(x_ref, o_ref, sem):
    cp = pltpu.make_async_copy(x_ref, o_ref, sem)
    cp.start()
    cp.wait()


def _dma_copy(x1):
    return pl.pallas_call(
        _dma_copy_kernel,
        out_shape=jax.ShapeDtypeStruct(x1.shape, x1.dtype),
        in_specs=[pl.BlockSpec(memory_space=pl.ANY)],
        out_specs=pl.BlockSpec(memory_space=pl.ANY),
        scratch_shapes=[pltpu.SemaphoreType.DMA(())],
    )(x1)


_ALIAS_PATH_OK = None


def _alias_path_works():
    """One-time probe: does Mosaic accept (and correctly keep the data of)
    an un-written aliased output? Cached so the probe compiles only once."""
    global _ALIAS_PATH_OK
    if _ALIAS_PATH_OK is None:
        try:
            probe = jnp.arange(8 * 128, dtype=jnp.float32).reshape(8, 128)
            probe_host = np.asarray(probe)  # snapshot before any donation
            out = jax.block_until_ready(_alias_passthrough(probe))
            _ALIAS_PATH_OK = bool(np.array_equal(np.asarray(out), probe_host))
        except Exception:
            _ALIAS_PATH_OK = False
    return _ALIAS_PATH_OK


def dropx2_fusion_pallas(x1, x2):
    """DropX2Fusion forward with a mandated Pallas kernel boundary."""
    del x2  # dropped, exactly as in the PyTorch module
    if _alias_path_works():
        return _alias_passthrough(x1)   # zero-copy: output aliases x1's buffer
    return _dma_copy(x1)                # single raw-rate HBM->HBM DMA


if __name__ == "__main__":
    key = jax.random.PRNGKey(0)
    k1, k2 = jax.random.split(key)
    seq, dim = 8, 512  # dim=512 matches the module's default `dim`
    x1 = jax.random.normal(k1, (seq, dim), dtype=jnp.float32)
    x2 = jax.random.normal(k2, (seq, dim), dtype=jnp.float32)

    x1_host = np.asarray(x1)  # host reference snapshot (before any donation)

    # Hot path (true module equivalent): free alias, verified first.
    fast = dropx2_fusion(x1, x2)
    fast = jax.block_until_ready(fast)
    assert fast.shape == x1_host.shape and fast.dtype == x1_host.dtype
    assert np.array_equal(np.asarray(fast), x1_host)

    # Mandated Pallas-kernel path: aliased no-op (or single whole-array DMA).
    out = dropx2_fusion_pallas(x1, x2)
    out = jax.block_until_ready(out)
    assert out.shape == x1_host.shape and out.dtype == x1_host.dtype
    assert np.array_equal(np.asarray(out), x1_host)

    print("KERNEL_OK")
</pallas_src>

<mosaic_0001>
module attributes {stable_mosaic.version = 11 : i64} {
  func.func @_touch_kernel(%arg0: memref<8x128xf32, #tpu.memory_space<any>>, %arg1: memref<8x128xf32, #tpu.memory_space<any>>) attributes {dimension_semantics = [], scalar_prefetch = 0 : i64, scratch_operands = 0 : i64, tpu.core_type = #tpu.core_type<tc>} {
    return
  }
}

module attributes {stable_mosaic.version = 11 : i64} {
  func.func @_dma_copy_kernel(%arg0: memref<8x512xf32, #tpu.memory_space<any>>, %arg1: memref<8x512xf32, #tpu.memory_space<any>>, %arg2: memref<!tpu.dma_semaphore, #tpu.memory_space<semaphore_mem>>) attributes {dimension_semantics = [], scalar_prefetch = 0 : i64, scratch_operands = 1 : i64, tpu.core_type = #tpu.core_type<tc>} {
    tpu.enqueue_dma source(%arg0 : memref<8x512xf32, #tpu.memory_space<any>>) target(%arg1 : memref<8x512xf32, #tpu.memory_space<any>>) target_semaphore(%arg2 : memref<!tpu.dma_semaphore, #tpu.memory_space<semaphore_mem>>)
    tpu.wait_dma2 semaphore(%arg2 : memref<!tpu.dma_semaphore, #tpu.memory_space<semaphore_mem>>) src(%arg0 : memref<8x512xf32, #tpu.memory_space<any>>) dst(%arg1 : memref<8x512xf32, #tpu.memory_space<any>>)
    return
  }
}

</mosaic_0001>

<llo_original>
// kernel: tpu_custom_call.1
$region0: #{tpu_custom_call.1}
  #allocation0 [shape = 'u32[]', space=smem, size = 0x4, offset = 0x4, fixed_abs, tag = 'smem constant byte address 0x4 - core index']
  #allocation1 [shape = 'u32[144,128]{1,0:T(1,128)}', space=vmem, size = 0x12000, scoped, tag = 'internal scratch']
  %s0 = inlined_call_operand.hbm [shape: f32[8,128], index: 0, kind: input, shape index: {}, may-alias: {0,1}]
  %s1 = inlined_call_operand.hbm [shape: f32[8,128], index: 1, kind: output, shape index: {}, may-alias: {0,1}]
  %s2 = sld [smem:[#allocation0]]
  $region2: #{tpu_custom_call.1} parent=0
    _
  %s4 = ssub.s32 1, %s2
  %s5 = scalar_select 0, %s4, %s2

// kernel: tpu_custom_call.1
$region0: #{tpu_custom_call.1}
  #allocation0 [shape = 'u32[]', space=smem, size = 0x4, offset = 0x4, fixed_abs, tag = 'smem constant byte address 0x4 - core index']
  #allocation1 [shape = 'u32[144,128]{1,0:T(1,128)}', space=vmem, size = 0x12000, scoped, tag = 'internal scratch']
  #allocation2 [shape = 's32[1]{0}', space=sflag, size = 0x4, scoped, tag = 'scratch operand']
  #allocation3 [shape = 's32[]', space=sflag, size = 0x4, offset = 0, fixed_abs, tag = 'sflag constant byte address 0x0 - dummy sync flag']
  #allocation4 [shape = 'u32[0]{0}', space=smem, size = 0, offset = 0, fixed_abs, tag = 'smem constant byte address 0x0 - null']
  %s0 = inlined_call_operand.hbm [shape: f32[8,512], index: 0, kind: input, shape index: {}]
  %s1 = inlined_call_operand.hbm [shape: f32[8,512], index: 1, kind: output, shape index: {}]
  %s2 = sld [smem:[#allocation0]]
  $region2: #{tpu_custom_call.1} parent=0
    _
  %s4 = ssub.s32 1, %s2
  %s5 = scalar_select 0, %s4, %s2
  %s7 = sshll.u32 1, 14
  %s8 = sxor.u32 4294967295, %s7
  %s11 = sshll.u32 3, 24
  %s12 = sxor.u32 4294967295, %s11
  %s13 = sand.u32 0, %s12
  %s15 = sor.u32 %s13, 0
  %18 = dma.general %s0, 512, %s1, [#allocation2], [#allocation3], [#allocation4], %s15, 0
  %s19 = smul.u32 8, 1
  %s20 = smul.u32 %s19, 4
  %s21 = sshll.u32 %s20, 4
  %22 = dma.done [#allocation2], %s21
  %23 = vsyncmov [#allocation2]
  %s24 = vpop.sfrf %23
  %p25 = scmp.eq.s32.totalorder %s24, 0
  %p26 = pneg %p25
  %28 = shalt.err (%p26)

</llo_original>
